<compile_context>
chip_gen: v5e
topology: v5e:2x2
jax: 0.10.0
libtpu: 0.0.40
codegen_flags: <defaults>
</compile_context>

<pallas_src>
import jax
import jax.numpy as jnp
from jax.experimental import pallas as pl
from jax.experimental.pallas import tpu as pltpu

# Small shapes consistent with the module (nn.Linear(768, 1) fixes H=768).
B = 2      # batch
S = 16     # sequence length
H = 768    # hidden size
N = 8      # number of sentences (cls positions)
VOCAB = 32


def summarizer_kernel(top_ref,     # VMEM (1, S, H) f32   (one batch row per grid step)
                      w_ref,       # VMEM (1, H)    f32   (fc weight as a row)
                      b_ref,       # SMEM (1,)      f32   (fc bias, scalar read)
                      clss_ref,    # VMEM (1, 1, N) int32
                      maskc_ref,   # VMEM (1, 1, N) f32
                      out_ref):    # VMEM (1, 1, N) f32
    top = top_ref[0]                       # (S, H)
    w = w_ref[...]                         # (1, H)
    s_len = top.shape[0]

    # fc is linear, so it commutes with the cls gather: project every position
    # first (VPU multiply + XLU lane reduce -- no MXU for an output width of 1).
    proj = jnp.sum(top * w, axis=-1, keepdims=True)                 # (S, 1)

    # Gather the N cls scores with a one-hot select + sublane reduce.
    clss_row = clss_ref[0]                                          # (1, N) int32
    n_sent = clss_row.shape[-1]
    row_ids = jax.lax.broadcasted_iota(jnp.int32, (s_len, n_sent), 0)
    onehot = (row_ids == clss_row).astype(jnp.float32)              # (S, N)
    scores = jnp.sum(onehot * proj, axis=0, keepdims=True)          # (1, N)

    # h = fc(sents_vec); sent_scores = sigmoid(h) * mask_clss
    # (pre-fc mask multiply is skipped: the post-sigmoid mask zeroes those
    #  entries, so the result is identical to the reference module.)
    h = scores + b_ref[0]
    out_ref[0] = (jax.nn.sigmoid(h) * maskc_ref[0]).astype(out_ref.dtype)


def pallas_summarizer_head(top_vec, clss, mask_clss, w, bias):
    """Gather-at-cls + Linear(H,1) + sigmoid + mask head in one Pallas call."""
    b_sz, s_len, h_dim = top_vec.shape
    n_sent = clss.shape[1]

    w_row = w.reshape(1, h_dim).astype(jnp.float32)
    bias_1 = bias.reshape(1).astype(jnp.float32)
    clss_3d = clss.astype(jnp.int32).reshape(b_sz, 1, n_sent)
    maskc_3d = mask_clss.astype(jnp.float32).reshape(b_sz, 1, n_sent)

    out = pl.pallas_call(
        summarizer_kernel,
        out_shape=jax.ShapeDtypeStruct((b_sz, 1, n_sent), jnp.float32),
        grid=(b_sz,),
        in_specs=[
            pl.BlockSpec((1, s_len, h_dim), lambda b: (b, 0, 0)),
            pl.BlockSpec((1, h_dim), lambda b: (0, 0)),
            pl.BlockSpec(memory_space=pltpu.MemorySpace.SMEM),
            pl.BlockSpec((1, 1, n_sent), lambda b: (b, 0, 0)),
            pl.BlockSpec((1, 1, n_sent), lambda b: (b, 0, 0)),
        ],
        out_specs=pl.BlockSpec((1, 1, n_sent), lambda b: (b, 0, 0)),
        compiler_params=pltpu.CompilerParams(
            dimension_semantics=("parallel",)),
    )(top_vec.astype(jnp.float32), w_row, bias_1, clss_3d, maskc_3d)

    return out.reshape(b_sz, n_sent)


def funnel_summarizer_forward(params, x, segs, clss, mask, mask_clss):
    """Mirrors FunnelSummarizer.forward."""
    tok_emb, type_emb, fc_w, fc_b = params

    # --- encoder stand-in (plain JAX glue) ---
    # TODO(synk): replaces FunnelModel.from_pretrained(...) -- deterministic
    # token + token-type embeddings gated by the attention mask.
    top_vec = (tok_emb[x.astype(jnp.int32)]
               + type_emb[segs.astype(jnp.int32)]) * mask.astype(jnp.float32)[..., None]

    # --- Pallas head: project, gather cls scores, +bias, sigmoid, mask ---
    return pallas_summarizer_head(top_vec, clss, mask_clss, fc_w, fc_b)


def reference_forward(params, x, segs, clss, mask, mask_clss):
    tok_emb, type_emb, fc_w, fc_b = params
    top_vec = (tok_emb[x.astype(jnp.int32)]
               + type_emb[segs.astype(jnp.int32)]) * mask.astype(jnp.float32)[..., None]
    b_sz = top_vec.shape[0]
    sents_vec = top_vec[jnp.arange(b_sz)[:, None], clss.astype(jnp.int32)]   # (B, N, H)
    sents_vec = sents_vec * mask_clss.astype(jnp.float32)[:, :, None]
    h = jnp.einsum("bnh,ho->bno", sents_vec, fc_w)[..., 0] + fc_b[0]
    return jax.nn.sigmoid(h) * mask_clss.astype(jnp.float32)


if __name__ == "__main__":
    key = jax.random.PRNGKey(0)
    k_tok, k_type, k_w, k_b, k_x, k_seg, k_clss, k_mc = jax.random.split(key, 8)

    # Deterministic parameters (shapes implied by the module: Linear(768, 1)).
    tok_emb = jax.random.normal(k_tok, (VOCAB, H), dtype=jnp.float32) * 0.02
    type_emb = jax.random.normal(k_type, (2, H), dtype=jnp.float32) * 0.02
    fc_w = jax.random.normal(k_w, (H, 1), dtype=jnp.float32) * 0.05
    fc_b = jax.random.normal(k_b, (1,), dtype=jnp.float32)
    params = (tok_emb, type_emb, fc_w, fc_b)

    # Deterministic example inputs.
    x = jax.random.randint(k_x, (B, S), 0, VOCAB, dtype=jnp.int32)
    segs = jax.random.randint(k_seg, (B, S), 0, 2, dtype=jnp.int32)
    clss = jax.random.randint(k_clss, (B, N), 0, S, dtype=jnp.int32)
    mask = jnp.ones((B, S), dtype=jnp.float32)
    mask_clss = (jax.random.uniform(k_mc, (B, N)) > 0.3).astype(jnp.float32)

    out = funnel_summarizer_forward(params, x, segs, clss, mask, mask_clss)
    out = jax.block_until_ready(out)

    ref = reference_forward(params, x, segs, clss, mask, mask_clss)
    assert out.shape == (B, N)
    assert jnp.allclose(out, ref, atol=1e-5, rtol=1e-5), (out, ref)

    print("KERNEL_OK")
</pallas_src>

<mosaic_0001>
module attributes {stable_mosaic.version = 11 : i64} {
  func.func @summarizer_kernel(%arg0: i32, %arg1: memref<1x16x768xf32, #tpu.memory_space<vmem>>, %arg2: memref<1x768xf32, #tpu.memory_space<vmem>>, %arg3: memref<1xf32, #tpu.memory_space<smem>>, %arg4: memref<1x1x8xi32, #tpu.memory_space<vmem>>, %arg5: memref<1x1x8xf32, #tpu.memory_space<vmem>>, %arg6: memref<1x1x8xf32, #tpu.memory_space<vmem>>) attributes {dimension_semantics = [#tpu.dimension_semantics<parallel>], iteration_bounds = array<i64: 2>, scalar_prefetch = 0 : i64, scratch_operands = 0 : i64, tpu.core_type = #tpu.core_type<tc>, window_params = [{transform_indices = @transform_0, window_bounds = array<i64: 1, 16, 768>}, {pipeline_mode = #tpu.pipeline_mode<synchronous>, transform_indices = @transform_1, window_bounds = array<i64: 1, 768>}, {transform_indices = @transform_2, window_bounds = array<i64: 1>}, {transform_indices = @transform_3, window_bounds = array<i64: 1, 1, 8>}, {transform_indices = @transform_4, window_bounds = array<i64: 1, 1, 8>}, {transform_indices = @transform_5, window_bounds = array<i64: 1, 1, 8>}]} {
    %c0 = arith.constant 0 : index
    %c0_0 = arith.constant 0 : index
    %c0_1 = arith.constant 0 : index
    %0 = vector.load %arg1[%c0, %c0_0, %c0_1] : memref<1x16x768xf32, #tpu.memory_space<vmem>>, vector<1x16x768xf32>
    %1 = vector.shape_cast %0 : vector<1x16x768xf32> to vector<16x768xf32>
    %c0_2 = arith.constant 0 : index
    %c0_3 = arith.constant 0 : index
    %2 = vector.load %arg2[%c0_2, %c0_3] : memref<1x768xf32, #tpu.memory_space<vmem>>, vector<1x768xf32>
    %3 = vector.broadcast %2 : vector<1x768xf32> to vector<16x768xf32>
    %4 = arith.mulf %1, %3 : vector<16x768xf32>
    %cst = arith.constant dense<0.000000e+00> : vector<16xf32>
    %5 = vector.multi_reduction <add>, %4, %cst [1] : vector<16x768xf32> to vector<16xf32>
    %6 = vector.shape_cast %5 : vector<16xf32> to vector<16x1xf32>
    %c0_4 = arith.constant 0 : index
    %c0_5 = arith.constant 0 : index
    %c0_6 = arith.constant 0 : index
    %7 = vector.load %arg4[%c0_4, %c0_5, %c0_6] : memref<1x1x8xi32, #tpu.memory_space<vmem>>, vector<1x1x8xi32>
    %8 = vector.shape_cast %7 : vector<1x1x8xi32> to vector<1x8xi32>
    %9 = tpu.iota {dimensions = array<i32: 0>} : vector<16x8xi32>
    %10 = vector.broadcast %8 : vector<1x8xi32> to vector<16x8xi32>
    %11 = arith.cmpi eq, %9, %10 : vector<16x8xi32>
    %12 = arith.extui %11 : vector<16x8xi1> to vector<16x8xi32>
    %13 = arith.sitofp %12 : vector<16x8xi32> to vector<16x8xf32>
    %14 = vector.broadcast %6 : vector<16x1xf32> to vector<16x8xf32>
    %15 = arith.mulf %13, %14 : vector<16x8xf32>
    %cst_7 = arith.constant dense<0.000000e+00> : vector<8xf32>
    %16 = vector.multi_reduction <add>, %15, %cst_7 [0] : vector<16x8xf32> to vector<8xf32>
    %17 = vector.shape_cast %16 : vector<8xf32> to vector<1x8xf32>
    %c0_8 = arith.constant 0 : index
    %18 = memref.load %arg3[%c0_8] : memref<1xf32, #tpu.memory_space<smem>>
    %19 = vector.broadcast %18 : f32 to vector<1x8xf32>
    %20 = arith.addf %17, %19 : vector<1x8xf32>
    %21 = arith.negf %20 : vector<1x8xf32>
    %22 = math.exp %21 : vector<1x8xf32>
    %cst_9 = arith.constant 1.000000e+00 : f32
    %23 = vector.broadcast %cst_9 : f32 to vector<1x8xf32>
    %24 = arith.addf %23, %22 : vector<1x8xf32>
    %25 = arith.divf %23, %24 : vector<1x8xf32>
    %c0_10 = arith.constant 0 : index
    %c0_11 = arith.constant 0 : index
    %c0_12 = arith.constant 0 : index
    %26 = vector.load %arg5[%c0_10, %c0_11, %c0_12] : memref<1x1x8xf32, #tpu.memory_space<vmem>>, vector<1x1x8xf32>
    %27 = vector.shape_cast %26 : vector<1x1x8xf32> to vector<1x8xf32>
    %28 = arith.mulf %25, %27 : vector<1x8xf32>
    %c0_13 = arith.constant 0 : index
    %c0_14 = arith.constant 0 : index
    %c0_15 = arith.constant 0 : index
    %29 = vector.load %arg6[%c0_13, %c0_14, %c0_15] : memref<1x1x8xf32, #tpu.memory_space<vmem>>, vector<1x1x8xf32>
    %30 = vector.shape_cast %29 : vector<1x1x8xf32> to vector<1x8xf32>
    %31 = vector.shape_cast %28 : vector<1x8xf32> to vector<1x1x8xf32>
    tpu.vector_store %arg6[%c0_13, %c0_14, %c0_15], %31 {strides = array<i32>} : memref<1x1x8xf32, #tpu.memory_space<vmem>>, vector<1x1x8xf32>,
    return
  }
  func.func @transform_0(%arg0: i32) -> (i32, i32, i32) {
    %c0_i32 = arith.constant 0 : i32
    %c0_i32_0 = arith.constant 0 : i32
    %c0_i32_1 = arith.constant 0 : i32
    return %arg0, %c0_i32, %c0_i32_0 : i32, i32, i32
  }
  func.func @transform_1(%arg0: i32) -> (i32, i32) {
    %c0_i32 = arith.constant 0 : i32
    %c0_i32_0 = arith.constant 0 : i32
    %c0_i32_1 = arith.constant 0 : i32
    return %c0_i32, %c0_i32_0 : i32, i32
  }
  func.func @transform_2(%arg0: i32) -> i32 {
    %c0_i32 = arith.constant 0 : i32
    %c0_i32_0 = arith.constant 0 : i32
    return %c0_i32 : i32
  }
  func.func @transform_3(%arg0: i32) -> (i32, i32, i32) {
    %c0_i32 = arith.constant 0 : i32
    %c0_i32_0 = arith.constant 0 : i32
    %c0_i32_1 = arith.constant 0 : i32
    return %arg0, %c0_i32, %c0_i32_0 : i32, i32, i32
  }
  func.func @transform_4(%arg0: i32) -> (i32, i32, i32) {
    %c0_i32 = arith.constant 0 : i32
    %c0_i32_0 = arith.constant 0 : i32
    %c0_i32_1 = arith.constant 0 : i32
    return %arg0, %c0_i32, %c0_i32_0 : i32, i32, i32
  }
  func.func @transform_5(%arg0: i32) -> (i32, i32, i32) {
    %c0_i32 = arith.constant 0 : i32
    %c0_i32_0 = arith.constant 0 : i32
    %c0_i32_1 = arith.constant 0 : i32
    return %arg0, %c0_i32, %c0_i32_0 : i32, i32, i32
  }
}

</mosaic_0001>

<llo_original>
// kernel: tpu_custom_call.1
$region0: #{tpu_custom_call.1}
  #allocation0 [shape = 'u32[]', space=smem, size = 0x4, offset = 0x4, fixed_abs, tag = 'smem constant byte address 0x4 - core index']
  #allocation1 [shape = 'u32[72,128]{1,0:T(1,128)}', space=vmem, size = 0x9000, scoped, tag = 'internal scratch']
  #allocation2 [shape = 'f32[1]{0:T(128)S(6)}', space=smem, size = 0x200, scoped, tag = 'scoped memory for tpu_custom_call.1']
  %s0 = inlined_call_operand.hbm [shape: f32[2,16,768], index: 0, kind: input, shape index: {}]
  %s1 = inlined_call_operand.hbm [shape: f32[1,768], index: 1, kind: input, shape index: {}]
  %s2 = inlined_call_operand.<no memory space> [shape: f32[1], index: 2, kind: input, shape index: {}]
  %s3 = inlined_call_operand.vmem [shape: s32[2,1,8], index: 3, kind: input, shape index: {}]
  %s4 = inlined_call_operand.vmem [shape: f32[2,1,8], index: 4, kind: input, shape index: {}]
  %s5 = inlined_call_operand.hbm [shape: f32[2,1,8], index: 5, kind: output, shape index: {}]
  %s6 = sld [smem:[#allocation0]]
  $region61: #{tpu_custom_call.1} parent=0
    _
  %s8 = ssub.s32 1, %s6
  %s9 = scalar_select 0, %s8, %s6
  %10 = sst [smem:[#allocation2]] %s2
  $region1: #{tpu_custom_call.1} parent=0
    #allocation3 [shape = 'u8[98304]{0}', space=vmem, size = 0x18000, scoped, tag = 'input window, operand 0']
    #allocation4 [shape = 's32[2]{0}', space=sflag, size = 0x8, scoped, tag = 'scoped memory for tpu_custom_call.1']
    #allocation5 [shape = 's32[2]{0}', space=sflag, size = 0x8, scoped, tag = 'scoped memory for tpu_custom_call.1']
    #allocation6 [shape = 'u8[3072]{0}', space=vmem, size = 0xc00, scoped, tag = 'input window, operand 1, single buffered']
    #allocation7 [shape = 's32[1]{0}', space=sflag, size = 0x4, scoped, tag = 'scoped memory for tpu_custom_call.1']
    #allocation8 [shape = 'u8[1024]{0}', space=vmem, size = 0x400, scoped, tag = 'output window, operand 0']
    %11 = vsyncpa [#allocation4], 0
    %s12 = scalar_lea.sflag [#allocation4], 1
    %13 = vsyncpa %s12, 0
    %14 = vsyncpa [#allocation7], 0
    %15 = vsyncpa [#allocation5], 0
    %s16 = scalar_lea.sflag [#allocation5], 1
    %17 = vsyncpa %s16, 0
    loop: start=0, step=1, limit=4
    $region2: #{tpu_custom_call.1} parent=1 // loop_pre_header
      _
    $region3: #{tpu_custom_call.1} parent=1 // loop_header
      %s19 = sphi 0, %s23
      %p20 = scmp.ge.s32.totalorder %s19, 4
      %s29 = sphi 0, %s31
      %s32 = sphi 0, %s29
      %s33 = sphi 0, %s32
      %s49 = sphi 0, %s33
      %s53 = sphi 0, %s53
      %s55 = sphi 0, %s53
      %s56 = sphi 0, %s55
      %s70 = sphi 0, %s56
      %s74 = sphi 0, %s74
      %s76 = sphi 0, %s74
      %s77 = sphi 0, %s76
      %s91 = sphi 0, %s77
      %s97 = sphi 0, %s99
      %s100 = sphi 0, %s97
      %s101 = sphi 0, %s100
      %s117 = sphi 0, %s101
      %s123 = sphi 0, %s125
      %s126 = sphi 0, %s123
      %s127 = sphi 0, %s126
      %s143 = sphi 0, %s127
      %s149 = sphi 0, %s151
      %s152 = sphi 0, %s149
      %s153 = sphi 0, %s152
      %s169 = sphi 0, %s153
    $region4: #{tpu_custom_call.1} parent=1 // loop_header_branch
      %22 = sbr.rel (%p20) target = $region8
    $region5: #{tpu_custom_call.1} parent=1 // loop_body
      %s24 = ssub.s32 %s19, 1
      %s25 = ssub.s32 %s19, 2
      %s26 = sadd.s32 %s19, 1
      %s27 = ssub.s32 %s19, %s26
      %p28 = scmp.eq.s32.totalorder %s27, 0
      %s30 = sadd.s32 %s29, 1
      %s31 = scalar_select %p28, %s29, %s30
      %p34 = pneg %p28
      %p35 = scmp.eq.s32.totalorder %s19, 1
      %p36 = por %p34, %p35
      %p37 = scmp.ne.s32.totalorder %s29, %s32
      %p38 = scmp.eq.s32.totalorder %s19, 0
      %p39 = por %p37, %p38
      %p40 = scmp.ne.s32.totalorder %s29, %s32
      %p41 = scmp.eq.s32.totalorder %s24, 1
      %p42 = por %p40, %p41
      %p43 = scmp.ne.s32.totalorder %s32, %s33
      %p44 = scmp.eq.s32.totalorder %s24, 0
      %p45 = por %p43, %p44
      %p46 = scmp.ne.s32.totalorder %s32, %s33
      %p47 = scmp.eq.s32.totalorder %s25, 1
      %p48 = por %p46, %p47
      %p50 = scmp.ne.s32.totalorder %s33, %s49
      %p51 = scmp.eq.s32.totalorder %s25, 0
      %p52 = por %p50, %p51
      %s54 = sadd.s32 %s53, 1
      %p57 = scmp.eq.s32.totalorder %s19, 1
      %p58 = scmp.ne.s32.totalorder %s53, %s55
      %p59 = scmp.eq.s32.totalorder %s19, 0
      %p60 = por %p58, %p59
      %p61 = scmp.ne.s32.totalorder %s53, %s55
      %p62 = scmp.eq.s32.totalorder %s24, 1
      %p63 = por %p61, %p62
      %p64 = scmp.ne.s32.totalorder %s55, %s56
      %p65 = scmp.eq.s32.totalorder %s24, 0
      %p66 = por %p64, %p65
      %p67 = scmp.ne.s32.totalorder %s55, %s56
      %p68 = scmp.eq.s32.totalorder %s25, 1
      %p69 = por %p67, %p68
      %p71 = scmp.ne.s32.totalorder %s56, %s70
      %p72 = scmp.eq.s32.totalorder %s25, 0
      %p73 = por %p71, %p72
      %s75 = sadd.s32 %s74, 1
      %p78 = scmp.eq.s32.totalorder %s19, 1
      %p79 = scmp.ne.s32.totalorder %s74, %s76
      %p80 = scmp.eq.s32.totalorder %s19, 0
      %p81 = por %p79, %p80
      %p82 = scmp.ne.s32.totalorder %s74, %s76
      %p83 = scmp.eq.s32.totalorder %s24, 1
      %p84 = por %p82, %p83
      %p85 = scmp.ne.s32.totalorder %s76, %s77
      %p86 = scmp.eq.s32.totalorder %s24, 0
      %p87 = por %p85, %p86
      %p88 = scmp.ne.s32.totalorder %s76, %s77
      %p89 = scmp.eq.s32.totalorder %s25, 1
      %p90 = por %p88, %p89
      %p92 = scmp.ne.s32.totalorder %s77, %s91
      %p93 = scmp.eq.s32.totalorder %s25, 0
      %p94 = por %p92, %p93
      %s95 = ssub.s32 %s19, %s26
      %p96 = scmp.eq.s32.totalorder %s95, 0
      %s98 = sadd.s32 %s97, 1
      %s99 = scalar_select %p96, %s97, %s98
      %p102 = pneg %p96
      %p103 = scmp.eq.s32.totalorder %s19, 1
      %p104 = por %p102, %p103
      %p105 = scmp.ne.s32.totalorder %s97, %s100
      %p106 = scmp.eq.s32.totalorder %s19, 0
      %p107 = por %p105, %p106
      %p108 = scmp.ne.s32.totalorder %s97, %s100
      %p109 = scmp.eq.s32.totalorder %s24, 1
      %p110 = por %p108, %p109
      %p111 = scmp.ne.s32.totalorder %s100, %s101
      %p112 = scmp.eq.s32.totalorder %s24, 0
      %p113 = por %p111, %p112
      %p114 = scmp.ne.s32.totalorder %s100, %s101
      %p115 = scmp.eq.s32.totalorder %s25, 1
      %p116 = por %p114, %p115
      %p118 = scmp.ne.s32.totalorder %s101, %s117
      %p119 = scmp.eq.s32.totalorder %s25, 0
      %p120 = por %p118, %p119
      %s121 = ssub.s32 %s19, %s26
      %p122 = scmp.eq.s32.totalorder %s121, 0
      %s124 = sadd.s32 %s123, 1
      %s125 = scalar_select %p122, %s123, %s124
      %p128 = pneg %p122
      %p129 = scmp.eq.s32.totalorder %s19, 1
      %p130 = por %p128, %p129
      %p131 = scmp.ne.s32.totalorder %s123, %s126
      %p132 = scmp.eq.s32.totalorder %s19, 0
      %p133 = por %p131, %p132
      %p134 = scmp.ne.s32.totalorder %s123, %s126
      %p135 = scmp.eq.s32.totalorder %s24, 1
      %p136 = por %p134, %p135
      %p137 = scmp.ne.s32.totalorder %s126, %s127
      %p138 = scmp.eq.s32.totalorder %s24, 0
      %p139 = por %p137, %p138
      %p140 = scmp.ne.s32.totalorder %s126, %s127
      %p141 = scmp.eq.s32.totalorder %s25, 1
      %p142 = por %p140, %p141
      %p144 = scmp.ne.s32.totalorder %s127, %s143
      %p145 = scmp.eq.s32.totalorder %s25, 0
      %p146 = por %p144, %p145
      %s147 = ssub.s32 %s19, %s26
      %p148 = scmp.eq.s32.totalorder %s147, 0
      %s150 = sadd.s32 %s149, 1
      %s151 = scalar_select %p148, %s149, %s150
      %p154 = pneg %p148
      %p155 = scmp.eq.s32.totalorder %s19, 1
      %p156 = por %p154, %p155
      %p157 = scmp.ne.s32.totalorder %s149, %s152
      %p158 = scmp.eq.s32.totalorder %s19, 0
      %p159 = por %p157, %p158
      %p160 = scmp.ne.s32.totalorder %s149, %s152
      %p161 = scmp.eq.s32.totalorder %s24, 1
      %p162 = por %p160, %p161
      %p163 = scmp.ne.s32.totalorder %s152, %s153
      %p164 = scmp.eq.s32.totalorder %s24, 0
      %p165 = por %p163, %p164
      %p166 = scmp.ne.s32.totalorder %s152, %s153
      %p167 = scmp.eq.s32.totalorder %s25, 1
      %p168 = por %p166, %p167
      %p170 = scmp.ne.s32.totalorder %s153, %s169
      %p171 = scmp.eq.s32.totalorder %s25, 0
      %p172 = por %p170, %p171
      %p173 = scmp.le.s32.totalorder 1, %s19
      %p174 = scmp.lt.s32.totalorder %s19, 3
      %p175 = pnand %p173, %p174
      %p176 = pneg %p175
      // Predicated region
      $region9: #{tpu_custom_call.1} parent=5 // pred_check
        _
      $region10: #{tpu_custom_call.1} parent=5 // pred_check_branch
        %178 = sbr.rel (%p175) target = $region12
      $region11: #{tpu_custom_call.1} parent=5 // pred_region
        %s179 = ssub.s32 %s19, 1
        // Predicated region
        $region13: #{tpu_custom_call.1} parent=11 // pred_check
          %p180 = pneg %p66
        $region14: #{tpu_custom_call.1} parent=11 // pred_check_branch
          %182 = sbr.rel (%p180) target = $region16
        $region15: #{tpu_custom_call.1} parent=11 // pred_region
          %184 = vsyncadd [#allocation7], 0
          %s186 = sshll.u32 %s1, 4
          %s187 = int_to_ptr.hbm [resolvable:$true] %s186
          %s188 = sshll.u32 [#allocation6], 4
          %s189 = int_to_ptr.vmem [resolvable:$true] %s188
          %191 = dma.hbm_to_vmem [thread:$0]  %s187, 96, %s189, [#allocation7]
        $region16: #{tpu_custom_call.1} parent=11 // pred_fallthru
          _
        // Predicated region
        $region17: #{tpu_custom_call.1} parent=11 // pred_check
          %p192 = pneg %p87
        $region18: #{tpu_custom_call.1} parent=11 // pred_check_branch
          %194 = sbr.rel (%p192) target = $region20
        $region19: #{tpu_custom_call.1} parent=11 // pred_region
          _
        $region20: #{tpu_custom_call.1} parent=11 // pred_fallthru
          _
      $region12: #{tpu_custom_call.1} parent=5 // pred_fallthru
        _
      %p195 = scmp.lt.s32.totalorder %s19, 2
      // Predicated region
      $region21: #{tpu_custom_call.1} parent=5 // pred_check
        %p196 = pneg %p195
      $region22: #{tpu_custom_call.1} parent=5 // pred_check_branch
        %198 = sbr.rel (%p196) target = $region24
      $region23: #{tpu_custom_call.1} parent=5 // pred_region
        // Predicated region
        $region25: #{tpu_custom_call.1} parent=23 // pred_check
          %p199 = pneg %p39
        $region26: #{tpu_custom_call.1} parent=23 // pred_check_branch
          %201 = sbr.rel (%p199) target = $region28
        $region27: #{tpu_custom_call.1} parent=23 // pred_region
          %s202 = sand.u32 %s29, 1
          %s203 = scalar_lea.sflag [#allocation4], %s202
          %s204 = sand.u32 %s29, 1
          %s205 = smul.addr %s204, 96
          %s206 = scalar_lea.vmem [#allocation3], %s205
          %208 = vsyncadd %s203, 0
          %s209 = smul.addr %s19, 12
          %s210 = smul.addr %s209, 8
          %s211 = scalar_lea.hbm %s0, %s210
          %s212 = sshll.u32 %s211, 4
          %s213 = int_to_ptr.hbm [resolvable:$true] %s212
          %s214 = sshll.u32 %s206, 4
          %s215 = int_to_ptr.vmem [resolvable:$true] %s214
          %220 = dma.hbm_to_vmem [thread:$0]  %s213, 1536, %s215, %s203, 768, 768, 48
        $region28: #{tpu_custom_call.1} parent=23 // pred_fallthru
          _
        // Predicated region
        $region29: #{tpu_custom_call.1} parent=23 // pred_check
          %p221 = pneg %p107
        $region30: #{tpu_custom_call.1} parent=23 // pred_check_branch
          %223 = sbr.rel (%p221) target = $region32
        $region31: #{tpu_custom_call.1} parent=23 // pred_region
          %p224 = scmp.lt.s32.totalorder %s19, 1
          %s225 = scalar_select %p224, %s19, 1
          %s226 = scalar_lea.vmem %s3, %s225
        $region32: #{tpu_custom_call.1} parent=23 // pred_fallthru
          _
        // Predicated region
        $region33: #{tpu_custom_call.1} parent=23 // pred_check
          %p227 = pneg %p133
        $region34: #{tpu_custom_call.1} parent=23 // pred_check_branch
          %229 = sbr.rel (%p227) target = $region36
        $region35: #{tpu_custom_call.1} parent=23 // pred_region
          %p230 = scmp.lt.s32.totalorder %s19, 1
          %s231 = scalar_select %p230, %s19, 1
          %s232 = scalar_lea.vmem %s4, %s231
        $region36: #{tpu_custom_call.1} parent=23 // pred_fallthru
          _
      $region24: #{tpu_custom_call.1} parent=5 // pred_fallthru
        _
      %p233 = scmp.le.s32.totalorder 1, %s19
      %p234 = scmp.lt.s32.totalorder %s19, 3
      %p235 = pnand %p233, %p234
      %p236 = pneg %p235
      // Predicated region
      $region37: #{tpu_custom_call.1} parent=5 // pred_check
        _
      $region38: #{tpu_custom_call.1} parent=5 // pred_check_branch
        %238 = sbr.rel (%p235) target = $region40
      $region39: #{tpu_custom_call.1} parent=5 // pred_region
        %s239 = ssub.s32 %s19, 1
        %s240 = sand.u32 %s32, 1
        %s241 = scalar_lea.sflag [#allocation4], %s240
        %s242 = sand.u32 %s32, 1
        %s243 = smul.addr %s242, 96
        %s244 = scalar_lea.vmem [#allocation3], %s243
        // Predicated region
        $region41: #{tpu_custom_call.1} parent=39 // pred_check
          %p245 = pneg %p45
        $region42: #{tpu_custom_call.1} parent=39 // pred_check_branch
          %247 = sbr.rel (%p245) target = $region44
        $region43: #{tpu_custom_call.1} parent=39 // pred_region
          %249 = dma.done %s241, 1536
        $region44: #{tpu_custom_call.1} parent=39 // pred_fallthru
          _
        // Predicated region
        $region45: #{tpu_custom_call.1} parent=39 // pred_check
          %p250 = pneg %p66
        $region46: #{tpu_custom_call.1} parent=39 // pred_check_branch
          %252 = sbr.rel (%p250) target = $region48
        $region47: #{tpu_custom_call.1} parent=39 // pred_region
          %254 = dma.done [#allocation7], 96
        $region48: #{tpu_custom_call.1} parent=39 // pred_fallthru
          _
        %s255 = sand.u32 %s32, 1
        %s256 = scalar_lea.sflag [#allocation4], %s255
        %s257 = sand.u32 %s32, 1
        %s258 = smul.addr %s257, 96
        %s259 = scalar_lea.vmem [#allocation3], %s258
        %p260 = pneg %p45
        %p261 = pneg %p42
        %p262 = pneg %p66
        %p263 = pneg %p63
        %p264 = pneg %p87
        %p265 = pneg %p84
        %p266 = scmp.lt.s32.totalorder %s24, 1
        %s267 = scalar_select %p266, %s24, 1
        %s268 = scalar_lea.vmem %s3, %s267
        %p269 = pneg %p113
        %p270 = pneg %p110
        %p271 = scmp.lt.s32.totalorder %s24, 1
        %s272 = scalar_select %p271, %s24, 1
        %s273 = scalar_lea.vmem %s4, %s272
        %p274 = pneg %p139
        %p275 = pneg %p136
        %p276 = pneg %p165
        %p277 = pneg %p162
        %s278 = sand.u32 %s152, 1
        %s279 = scalar_lea.sflag [#allocation5], %s278
        %s280 = sand.u32 %s152, 1
        %s281 = scalar_lea.vmem [#allocation8], %s280
        %p282 = scmp.lt.s32.totalorder %s24, 1
        %s283 = scalar_select %p282, %s24, 1
        %s284 = scalar_lea.vmem %s3, %s283
        %p285 = scmp.lt.s32.totalorder %s24, 1
        %s286 = scalar_select %p285, %s24, 1
        %s287 = scalar_lea.vmem %s4, %s286
        %v288 = vld [vmem:[%s244] sm:$0xff]
        %v289 = vld [vmem:[%s244 + $0x8] sm:$0xff]
        %v290 = vld [vmem:[%s244 + $0x10] sm:$0xff]
        %v291 = vld [vmem:[%s244 + $0x18] sm:$0xff]
        %v292 = vld [vmem:[%s244 + $0x20] sm:$0xff]
        %v293 = vld [vmem:[%s244 + $0x28] sm:$0xff]
        %v294 = vld [vmem:[%s244 + $0x30] sm:$0xff]
        %v295 = vld [vmem:[%s244 + $0x38] sm:$0xff]
        %v296 = vld [vmem:[%s244 + $0x40] sm:$0xff]
        %v297 = vld [vmem:[%s244 + $0x48] sm:$0xff]
        %v298 = vld [vmem:[%s244 + $0x50] sm:$0xff]
        %v299 = vld [vmem:[%s244 + $0x58] sm:$0xff]
        %v300 = vld [vmem:[#allocation6] sm:$0x3f]
        %v302 = vperm.slane %v300, 0
        %v303 = vperm.slane %v300, 1
        %v304 = vperm.slane %v300, 2
        %v305 = vperm.slane %v300, 3
        %v306 = vperm.slane %v300, 4
        %v307 = vperm.slane %v300, 5
        %v314 = vmul.f32 %v288, %v302
        %v315 = vmul.f32 %v289, %v303
        %v316 = vmul.f32 %v290, %v304
        %v317 = vmul.f32 %v291, %v305
        %v318 = vmul.f32 %v292, %v306
        %v319 = vmul.f32 %v293, %v307
        %v320 = vmul.f32 %v294, %v302
        %v321 = vmul.f32 %v295, %v303
        %v322 = vmul.f32 %v296, %v304
        %v323 = vmul.f32 %v297, %v305
        %v324 = vmul.f32 %v298, %v306
        %v325 = vmul.f32 %v299, %v307
        %v326 = vadd.f32 %v314, %v315
        %v327 = vadd.f32 %v326, %v316
        %v328 = vadd.f32 %v327, %v317
        %v329 = vadd.f32 %v328, %v318
        %v330 = vadd.f32 %v329, %v319
        %331 = vadd.xlane.f32.xlu0 %v330
        %v332 = vpop.xlane.xlu0 %331
        %v333 = vadd.f32 %v320, %v321
        %v334 = vadd.f32 %v333, %v322
        %v335 = vadd.f32 %v334, %v323
        %v336 = vadd.f32 %v335, %v324
        %v337 = vadd.f32 %v336, %v325
        %338 = vadd.xlane.f32.xlu0 %v337
        %v339 = vpop.xlane.xlu0 %338
        %v340 = vld [vmem:[%s284] sm:$0x1]
        %v341 = vlaneseq
        %v342 = vshrl.u32 %v341, 7
        %v343 = vadd.s32 %v342, 8
        %v344 = vperm.slane %v340, 0
        %vm345 = vcmp.eq.s32.totalorder %v342, %v344
        %vm346 = vcmp.eq.s32.totalorder %v343, %v344
        %v347 = vsel %vm345, 1, 0
        %v348 = vsel %vm346, 1, 0
        %v349 = vcvt.s32.f32 %v347
        %v350 = vcvt.s32.f32 %v348
        %v351 = vmul.f32 %v349, %v332
        %v352 = vmul.f32 %v350, %v339
        %vm353 = vcmask 64512
        %v354 = vsel %vm353, %v351, 0.0
        %v355 = vsel %vm353, %v352, 0.0
        %v356 = vadd.f32 %v354, %v355
        %v357 = vrot.slane %v356, 4
        %v358 = vadd.f32 %v356, %v357
        %v359 = vrot.slane %v358, 2
        %v360 = vadd.f32 %v358, %v359
        %v361 = vrot.slane %v360, 1
        %v362 = vadd.f32 %v360, %v361
        %s363 = sld [smem:[#allocation2]]
        %v364 = vstv %s363
        %v365 = vadd.f32 %v362, %v364
        %v366 = vxor.u32 %v365, 2147483648
        %v367 = vmul.f32 %v366, 1.442695
        %v368 = vpow.pop %v367
        %v369 = vadd.f32 %v368, 1.0
        %v370 = vrcp.pop %v369
        %v371 = vmul.f32 %v369, %v370
        %v372 = vsub.f32 1.0, %v371
        %v373 = vmul.f32 %v370, %v372
        %v374 = vadd.f32 %v370, %v373
        %vm375 = vweird.f32 %v369
        %vm376 = vweird.f32 %v370
        %vm377 = vmor %vm375, %vm376
        %v378 = vsel %vm377, %v370, %v374
        %v379 = vand.u32 2147483647, %v369
        %vm380 = vcmp.eq.f32.partialorder %v379, 8.507059e+37
        %v381 = vand.u32 %v369, 2147483648
        %v382 = vor.u32 1.1754944e-38, %v381
        %v383 = vsel %vm380, %v382, %v378
        %v384 = vmul.f32 1.0, %v383
        %v385 = vld [vmem:[%s287] sm:$0x1]
        %v386 = vmul.f32 %v384, %v385
        %vm387 = vcmask 57344
        %388 = vst.msk [vmem:[%s281] sm:$0x1] %vm387, %v386
        %s389 = sand.u32 %s152, 1
        %s390 = scalar_lea.sflag [#allocation5], %s389
        %s391 = sand.u32 %s152, 1
        %s392 = scalar_lea.vmem [#allocation8], %s391
        // Predicated region
        $region49: #{tpu_custom_call.1} parent=39 // pred_check
          %p393 = pneg %p162
        $region50: #{tpu_custom_call.1} parent=39 // pred_check_branch
          %395 = sbr.rel (%p393) target = $region52
        $region51: #{tpu_custom_call.1} parent=39 // pred_region
          %397 = vsyncadd %s390, 0
          %s398 = scalar_lea.hbm %s5, %s24
          %s400 = sshll.u32 %s392, 4
          %s401 = int_to_ptr.vmem [resolvable:$true] %s400
          %s402 = sshll.u32 %s398, 4
          %s403 = int_to_ptr.hbm [resolvable:$true] %s402
          %405 = dma.vmem_to_hbm [thread:$0]  %s401, 16, %s403, %s390
        $region52: #{tpu_custom_call.1} parent=39 // pred_fallthru
          _
      $region40: #{tpu_custom_call.1} parent=5 // pred_fallthru
        _
      %p406 = scmp.le.s32.totalorder 2, %s19
      // Predicated region
      $region53: #{tpu_custom_call.1} parent=5 // pred_check
        %p407 = pneg %p406
      $region54: #{tpu_custom_call.1} parent=5 // pred_check_branch
        %409 = sbr.rel (%p407) target = $region56
      $region55: #{tpu_custom_call.1} parent=5 // pred_region
        %s410 = ssub.s32 %s19, 2
        // Predicated region
        $region57: #{tpu_custom_call.1} parent=55 // pred_check
          %p411 = pneg %p168
        $region58: #{tpu_custom_call.1} parent=55 // pred_check_branch
          %413 = sbr.rel (%p411) target = $region60
        $region59: #{tpu_custom_call.1} parent=55 // pred_region
          %s414 = sand.u32 %s153, 1
          %s415 = scalar_lea.sflag [#allocation5], %s414
          %s416 = sand.u32 %s153, 1
          %s417 = scalar_lea.vmem [#allocation8], %s416
          %419 = dma.done %s415, 16
        $region60: #{tpu_custom_call.1} parent=55 // pred_fallthru
          _
      $region56: #{tpu_custom_call.1} parent=5 // pred_fallthru
        _
    $region6: #{tpu_custom_call.1} parent=1 // loop_footer
      %s23 = sadd.s32 1, %s19
    $region7: #{tpu_custom_call.1} parent=1 // loop_footer_branch
      %18 = sbr.rel target = $region3
    $region8: #{tpu_custom_call.1} parent=1 // loop_exit
      _
    %420 = vsyncpa [#allocation4], 1
    %s421 = scalar_lea.sflag [#allocation4], 1
    %422 = vsyncpa %s421, 1
    %423 = vsyncpa [#allocation7], 1
    %424 = vsyncpa [#allocation5], 1
    %s425 = scalar_lea.sflag [#allocation5], 1
    %426 = vsyncpa %s425, 1

</llo_original>
